<compile_context>
chip_gen: v5e
topology: v5e:2x2
jax: 0.10.0
libtpu: 0.0.40
codegen_flags: <defaults>
</compile_context>

<pallas_src>
import functools

import jax
import jax.numpy as jnp
from jax.experimental import pallas as pl
from jax.experimental.pallas import tpu as pltpu


# Classic 19-compare-exchange median-of-9 selection network (N. Devillard).
_MED9_NETWORK = (
    (1, 2), (4, 5), (7, 8),
    (0, 1), (3, 4), (6, 7),
    (1, 2), (4, 5), (7, 8),
    (0, 3), (5, 8), (4, 7),
    (3, 6), (1, 4), (2, 5),
    (4, 7), (4, 2), (6, 4),
    (4, 2),
)


def _odd_even_network(n):
    """Odd-even transposition sorting network as a compare-exchange list."""
    ops = []
    for p in range(n):
        for i in range(p % 2, n - 1, 2):
            ops.append((i, i + 1))
    return tuple(ops)


def _prune_network(ops, target):
    """Dead-code-eliminate compare-exchanges whose outputs never reach `target`.

    Returns tuples (a, b, mode) with mode in {"both", "min", "max"}:
      both: a<-min, b<-max ; min: only a<-min ; max: only b<-max.
    """
    live = {target}
    kept = []
    for a, b in reversed(ops):
        need_a, need_b = a in live, b in live
        if not (need_a or need_b):
            continue
        mode = "both" if (need_a and need_b) else ("min" if need_a else "max")
        kept.append((a, b, mode))
        live.add(a)
        live.add(b)
    kept.reverse()
    return tuple(kept)


def _median_network(n):
    ops = _MED9_NETWORK if n == 9 else _odd_even_network(n)
    return _prune_network(ops, (n - 1) // 2)  # torch.median -> lower median


def _median_blur_kernel(x_ref, o_ref, pad_ref, *, kh, kw, H, W, ops, med_idx):
    # x_ref : (T, H, W) block of input planes in VMEM
    # o_ref : (T, H, W) output block
    # pad_ref: (T, H+2ph, W+2pw) VMEM halo scratch (fused zero padding)
    ph, pw = (kh - 1) // 2, (kw - 1) // 2
    T = x_ref.shape[0]
    Hp, Wp = H + 2 * ph, W + 2 * pw
    dt = pad_ref.dtype

    # Fused zero padding: zero only the thin halo strips (cheap store traffic),
    # then drop the block interior in.  The scratch persists per core across
    # grid steps, but re-zeroing the strips each step is far cheaper than a
    # per-core first-step predicate and keeps both v7x TensorCores correct.
    if ph > 0:
        pad_ref[:, :ph, :] = jnp.zeros((T, ph, Wp), dt)
        pad_ref[:, ph + H:, :] = jnp.zeros((T, ph, Wp), dt)
    if pw > 0:
        pad_ref[:, :, :pw] = jnp.zeros((T, Hp, pw), dt)
        pad_ref[:, :, pw + W:] = jnp.zeros((T, Hp, pw), dt)
    pad_ref[:, ph:ph + H, pw:pw + W] = x_ref[...]

    # kh*kw shifted neighborhood windows, sliced lazily from the scratch ref at
    # first use (slice-on-load; no materialized padded value, no lax.slice copies).
    vals = {}

    def get(idx):
        if idx not in vals:
            di, dj = divmod(idx, kw)
            vals[idx] = pad_ref[:, di:di + H, dj:dj + W]
        return vals[idx]

    # Pruned median-selection network: pure elementwise min/max on the VPU,
    # computed in the input dtype (bf16 stays bf16 on v6e/v7x).
    for a, b, mode in ops:
        va, vb = get(a), get(b)
        if mode != "max":
            vals[a] = jnp.minimum(va, vb)
        if mode != "min":
            vals[b] = jnp.maximum(va, vb)

    o_ref[...] = get(med_idx)


def _plan_plane_tile(bc, h, w, kh, kw, itemsize):
    """VMEM-aware plane-tile planner.

    Accounts for double-buffered in/out blocks, the halo scratch and the live
    min/max-network temporaries; keeps the per-step working set under a budget
    that fits the scoped VMEM of v5e/v6e and v7x's 64 MiB per-core VMEM, while
    keeping >= 4 grid steps for pipelining (>= 2 per v7x TensorCore).
    """
    ph, pw = (kh - 1) // 2, (kw - 1) // 2
    plane = h * w * itemsize
    padded_plane = (h + 2 * ph) * (w + 2 * pw) * itemsize
    n_live = kh * kw + 2  # upper bound on live network temporaries
    per_plane_ws = 4 * plane + padded_plane + n_live * plane
    budget = 20 << 20
    t_max = max(1, budget // per_plane_ws)

    # Aim for ~8 grid steps (>= 4 per v7x core) ...
    t = max(1, min(t_max, bc // 8))
    # ... but grow the tile (bigger DMAs, less per-step overhead) while blocks
    # are small and at least 4 pipelined steps remain.
    while (t * 2 <= t_max and t * 2 <= bc and t * plane < (512 << 10)
           and pl.cdiv(bc, t * 2) >= 4):
        t *= 2
    t = max(1, min(t, bc, t_max))

    # Prefer a nearby divisor of bc (avoids dead-plane padding); otherwise pad.
    lo = max(1, (3 * t) // 4)
    for cand in range(t, lo, -1):
        if bc % cand == 0:
            t = cand
            break
    bc_pad = pl.cdiv(bc, t) * t
    est_ws = t * per_plane_ws
    return t, bc_pad, est_ws


def median_blur(x, kernel_size=(3, 3)):
    """x: (B, C, H, W) -> (B, C, H, W); per-pixel lower median over the
    zero-padded kh x kw neighborhood (matches the PyTorch MedianBlur module)."""
    if x.ndim != 4:
        raise ValueError(f"expected BxCxHxW input, got shape {x.shape}")
    kh, kw = kernel_size
    if kh % 2 != 1 or kw % 2 != 1 or kh < 1 or kw < 1:
        raise ValueError("median_blur requires odd kernel sizes (got %r)" % (kernel_size,))

    b, c, h, w = x.shape
    ph, pw = (kh - 1) // 2, (kw - 1) // 2
    bc = b * c

    n = kh * kw
    ops = _median_network(n)
    med_idx = (n - 1) // 2

    t, bc_pad, est_ws = _plan_plane_tile(bc, h, w, kh, kw, x.dtype.itemsize)
    grid = (bc_pad // t,)

    x2 = x.reshape(bc, h, w)
    if bc_pad != bc:
        x2 = jnp.pad(x2, ((0, bc_pad - bc), (0, 0), (0, 0)))

    kernel = functools.partial(
        _median_blur_kernel, kh=kh, kw=kw, H=h, W=w, ops=ops, med_idx=med_idx
    )

    # TODO(synk): strip-tile H with a (kh-1)-row halo (manual DMA) and repack
    # narrow-W planes lane-dense (planes on the 128-lane axis) for images where
    # a single plane exceeds the VMEM budget or W << 128.
    out = pl.pallas_call(
        kernel,
        out_shape=jax.ShapeDtypeStruct((bc_pad, h, w), x.dtype),
        grid_spec=pltpu.PrefetchScalarGridSpec(
            num_scalar_prefetch=0,
            grid=grid,
            in_specs=[pl.BlockSpec((t, h, w), lambda i: (i, 0, 0))],
            out_specs=pl.BlockSpec((t, h, w), lambda i: (i, 0, 0)),
            scratch_shapes=[pltpu.VMEM((t, h + 2 * ph, w + 2 * pw), x.dtype)],
        ),
        compiler_params=pltpu.CompilerParams(
            dimension_semantics=("parallel",),
            vmem_limit_bytes=int(min(max(2 * est_ws, 32 << 20), 48 << 20)),
        ),
    )(x2)
    if bc_pad != bc:
        out = out[:bc]
    return out.reshape(b, c, h, w)


def _median_blur_ref(x, kernel_size=(3, 3)):
    """Pure-JAX reference with identical semantics (lower median, zero padding)."""
    b, c, h, w = x.shape
    kh, kw = kernel_size
    ph, pw = (kh - 1) // 2, (kw - 1) // 2
    xp = jnp.pad(x, ((0, 0), (0, 0), (ph, ph), (pw, pw)))
    patches = jnp.stack(
        [xp[:, :, di:di + h, dj:dj + w] for di in range(kh) for dj in range(kw)],
        axis=2,
    )  # (B, C, kh*kw, H, W)
    srt = jnp.sort(patches, axis=2)
    return srt[:, :, (kh * kw - 1) // 2]


if __name__ == "__main__":
    key = jax.random.PRNGKey(0)
    x = jax.random.uniform(key, (2, 4, 16, 16), dtype=jnp.float32)

    out = median_blur(x, kernel_size=(3, 3))
    out = jax.block_until_ready(out)

    ref = _median_blur_ref(x, kernel_size=(3, 3))
    assert out.shape == (2, 4, 16, 16)
    assert jnp.allclose(out, ref, atol=1e-6), "mismatch vs reference"

    print("KERNEL_OK")
</pallas_src>

<mosaic_0001>
module attributes {stable_mosaic.version = 11 : i64} {
  func.func @_median_blur_kernel(%arg0: i32, %arg1: memref<2x16x16xf32, #tpu.memory_space<vmem>>, %arg2: memref<2x16x16xf32, #tpu.memory_space<vmem>>, %arg3: memref<2x18x18xf32, #tpu.memory_space<vmem>>) attributes {dimension_semantics = [#tpu.dimension_semantics<parallel>], iteration_bounds = array<i64: 4>, scalar_prefetch = 0 : i64, scratch_operands = 1 : i64, tpu.core_type = #tpu.core_type<tc>, window_params = [{transform_indices = @transform_0, window_bounds = array<i64: 2, 16, 16>}, {transform_indices = @transform_1, window_bounds = array<i64: 2, 16, 16>}]} {
    %cst = arith.constant 0.000000e+00 : f32
    %0 = vector.broadcast %cst : f32 to vector<2x1x18xf32>
    %c0 = arith.constant 0 : index
    %c0_0 = arith.constant 0 : index
    %c0_1 = arith.constant 0 : index
    %1 = vector.load %arg3[%c0, %c0_0, %c0_1] : memref<2x18x18xf32, #tpu.memory_space<vmem>>, vector<2x1x18xf32>
    tpu.vector_store %arg3[%c0, %c0_0, %c0_1], %0 {strides = array<i32>} : memref<2x18x18xf32, #tpu.memory_space<vmem>>, vector<2x1x18xf32>,
    %cst_2 = arith.constant 0.000000e+00 : f32
    %2 = vector.broadcast %cst_2 : f32 to vector<2x1x18xf32>
    %c0_3 = arith.constant 0 : index
    %c17 = arith.constant 17 : index
    %c0_4 = arith.constant 0 : index
    %3 = vector.load %arg3[%c0_3, %c17, %c0_4] : memref<2x18x18xf32, #tpu.memory_space<vmem>>, vector<2x1x18xf32>
    tpu.vector_store %arg3[%c0_3, %c17, %c0_4], %2 {strides = array<i32>} : memref<2x18x18xf32, #tpu.memory_space<vmem>>, vector<2x1x18xf32>,
    %cst_5 = arith.constant 0.000000e+00 : f32
    %4 = vector.broadcast %cst_5 : f32 to vector<2x18x1xf32>
    %c0_6 = arith.constant 0 : index
    %c0_7 = arith.constant 0 : index
    %c0_8 = arith.constant 0 : index
    %5 = vector.load %arg3[%c0_6, %c0_7, %c0_8] : memref<2x18x18xf32, #tpu.memory_space<vmem>>, vector<2x18x1xf32>
    tpu.vector_store %arg3[%c0_6, %c0_7, %c0_8], %4 {strides = array<i32>} : memref<2x18x18xf32, #tpu.memory_space<vmem>>, vector<2x18x1xf32>,
    %cst_9 = arith.constant 0.000000e+00 : f32
    %6 = vector.broadcast %cst_9 : f32 to vector<2x18x1xf32>
    %c0_10 = arith.constant 0 : index
    %c0_11 = arith.constant 0 : index
    %c17_12 = arith.constant 17 : index
    %7 = vector.load %arg3[%c0_10, %c0_11, %c17_12] : memref<2x18x18xf32, #tpu.memory_space<vmem>>, vector<2x18x1xf32>
    tpu.vector_store %arg3[%c0_10, %c0_11, %c17_12], %6 {strides = array<i32>} : memref<2x18x18xf32, #tpu.memory_space<vmem>>, vector<2x18x1xf32>,
    %c0_13 = arith.constant 0 : index
    %c0_14 = arith.constant 0 : index
    %c0_15 = arith.constant 0 : index
    %8 = vector.load %arg1[%c0_13, %c0_14, %c0_15] : memref<2x16x16xf32, #tpu.memory_space<vmem>>, vector<2x16x16xf32>
    %c0_16 = arith.constant 0 : index
    %c1 = arith.constant 1 : index
    %c1_17 = arith.constant 1 : index
    %9 = vector.load %arg3[%c0_16, %c1, %c1_17] : memref<2x18x18xf32, #tpu.memory_space<vmem>>, vector<2x16x16xf32>
    tpu.vector_store %arg3[%c0_16, %c1, %c1_17], %8 {strides = array<i32>} : memref<2x18x18xf32, #tpu.memory_space<vmem>>, vector<2x16x16xf32>,
    %c0_18 = arith.constant 0 : index
    %c0_19 = arith.constant 0 : index
    %c1_20 = arith.constant 1 : index
    %10 = vector.load %arg3[%c0_18, %c0_19, %c1_20] : memref<2x18x18xf32, #tpu.memory_space<vmem>>, vector<2x16x16xf32>
    %c0_21 = arith.constant 0 : index
    %c0_22 = arith.constant 0 : index
    %c2 = arith.constant 2 : index
    %11 = vector.load %arg3[%c0_21, %c0_22, %c2] : memref<2x18x18xf32, #tpu.memory_space<vmem>>, vector<2x16x16xf32>
    %12 = arith.minimumf %10, %11 : vector<2x16x16xf32>
    %13 = arith.maximumf %10, %11 : vector<2x16x16xf32>
    %c0_23 = arith.constant 0 : index
    %c1_24 = arith.constant 1 : index
    %c1_25 = arith.constant 1 : index
    %14 = vector.load %arg3[%c0_23, %c1_24, %c1_25] : memref<2x18x18xf32, #tpu.memory_space<vmem>>, vector<2x16x16xf32>
    %c0_26 = arith.constant 0 : index
    %c1_27 = arith.constant 1 : index
    %c2_28 = arith.constant 2 : index
    %15 = vector.load %arg3[%c0_26, %c1_27, %c2_28] : memref<2x18x18xf32, #tpu.memory_space<vmem>>, vector<2x16x16xf32>
    %16 = arith.minimumf %14, %15 : vector<2x16x16xf32>
    %17 = arith.maximumf %14, %15 : vector<2x16x16xf32>
    %c0_29 = arith.constant 0 : index
    %c2_30 = arith.constant 2 : index
    %c1_31 = arith.constant 1 : index
    %18 = vector.load %arg3[%c0_29, %c2_30, %c1_31] : memref<2x18x18xf32, #tpu.memory_space<vmem>>, vector<2x16x16xf32>
    %c0_32 = arith.constant 0 : index
    %c2_33 = arith.constant 2 : index
    %c2_34 = arith.constant 2 : index
    %19 = vector.load %arg3[%c0_32, %c2_33, %c2_34] : memref<2x18x18xf32, #tpu.memory_space<vmem>>, vector<2x16x16xf32>
    %20 = arith.minimumf %18, %19 : vector<2x16x16xf32>
    %21 = arith.maximumf %18, %19 : vector<2x16x16xf32>
    %c0_35 = arith.constant 0 : index
    %c0_36 = arith.constant 0 : index
    %c0_37 = arith.constant 0 : index
    %22 = vector.load %arg3[%c0_35, %c0_36, %c0_37] : memref<2x18x18xf32, #tpu.memory_space<vmem>>, vector<2x16x16xf32>
    %23 = arith.minimumf %22, %12 : vector<2x16x16xf32>
    %24 = arith.maximumf %22, %12 : vector<2x16x16xf32>
    %c0_38 = arith.constant 0 : index
    %c1_39 = arith.constant 1 : index
    %c0_40 = arith.constant 0 : index
    %25 = vector.load %arg3[%c0_38, %c1_39, %c0_40] : memref<2x18x18xf32, #tpu.memory_space<vmem>>, vector<2x16x16xf32>
    %26 = arith.minimumf %25, %16 : vector<2x16x16xf32>
    %27 = arith.maximumf %25, %16 : vector<2x16x16xf32>
    %c0_41 = arith.constant 0 : index
    %c2_42 = arith.constant 2 : index
    %c0_43 = arith.constant 0 : index
    %28 = vector.load %arg3[%c0_41, %c2_42, %c0_43] : memref<2x18x18xf32, #tpu.memory_space<vmem>>, vector<2x16x16xf32>
    %29 = arith.minimumf %28, %20 : vector<2x16x16xf32>
    %30 = arith.maximumf %28, %20 : vector<2x16x16xf32>
    %31 = arith.minimumf %24, %13 : vector<2x16x16xf32>
    %32 = arith.maximumf %24, %13 : vector<2x16x16xf32>
    %33 = arith.minimumf %27, %17 : vector<2x16x16xf32>
    %34 = arith.maximumf %27, %17 : vector<2x16x16xf32>
    %35 = arith.minimumf %30, %21 : vector<2x16x16xf32>
    %36 = arith.maximumf %30, %21 : vector<2x16x16xf32>
    %37 = arith.maximumf %23, %26 : vector<2x16x16xf32>
    %38 = arith.minimumf %34, %36 : vector<2x16x16xf32>
    %39 = arith.minimumf %33, %35 : vector<2x16x16xf32>
    %40 = arith.maximumf %33, %35 : vector<2x16x16xf32>
    %41 = arith.maximumf %37, %29 : vector<2x16x16xf32>
    %42 = arith.maximumf %31, %39 : vector<2x16x16xf32>
    %43 = arith.minimumf %32, %38 : vector<2x16x16xf32>
    %44 = arith.minimumf %42, %40 : vector<2x16x16xf32>
    %45 = arith.minimumf %44, %43 : vector<2x16x16xf32>
    %46 = arith.maximumf %44, %43 : vector<2x16x16xf32>
    %47 = arith.maximumf %41, %45 : vector<2x16x16xf32>
    %48 = arith.minimumf %47, %46 : vector<2x16x16xf32>
    %c0_44 = arith.constant 0 : index
    %c0_45 = arith.constant 0 : index
    %c0_46 = arith.constant 0 : index
    %49 = vector.load %arg2[%c0_44, %c0_45, %c0_46] : memref<2x16x16xf32, #tpu.memory_space<vmem>>, vector<2x16x16xf32>
    tpu.vector_store %arg2[%c0_44, %c0_45, %c0_46], %48 {strides = array<i32>} : memref<2x16x16xf32, #tpu.memory_space<vmem>>, vector<2x16x16xf32>,
    return
  }
  func.func @transform_0(%arg0: i32) -> (i32, i32, i32) {
    %c0_i32 = arith.constant 0 : i32
    %c0_i32_0 = arith.constant 0 : i32
    %c0_i32_1 = arith.constant 0 : i32
    return %arg0, %c0_i32, %c0_i32_0 : i32, i32, i32
  }
  func.func @transform_1(%arg0: i32) -> (i32, i32, i32) {
    %c0_i32 = arith.constant 0 : i32
    %c0_i32_0 = arith.constant 0 : i32
    %c0_i32_1 = arith.constant 0 : i32
    return %arg0, %c0_i32, %c0_i32_0 : i32, i32, i32
  }
}

</mosaic_0001>

<llo_original>
// kernel: tpu_custom_call.1
$region0: #{tpu_custom_call.1}
  #allocation0 [shape = 'u32[]', space=smem, size = 0x4, offset = 0x4, fixed_abs, tag = 'smem constant byte address 0x4 - core index']
  #allocation1 [shape = 'u32[72,128]{1,0:T(1,128)}', space=vmem, size = 0x9000, scoped, tag = 'internal scratch']
  #allocation2 [shape = 'f32[2,18,18]{2,1,0:T(8,128)}', space=vmem, size = 0x6000, scoped, tag = 'scratch operand']
  %s0 = inlined_call_operand.hbm [shape: f32[8,16,16], index: 0, kind: input, shape index: {}]
  %s1 = inlined_call_operand.hbm [shape: f32[8,16,16], index: 1, kind: output, shape index: {}]
  %s2 = sld [smem:[#allocation0]]
  $region41: #{tpu_custom_call.1} parent=0
    _
  %s4 = ssub.s32 1, %s2
  %s5 = scalar_select 0, %s4, %s2
  $region1: #{tpu_custom_call.1} parent=0
    #allocation3 [shape = 'u8[32768]{0}', space=vmem, size = 0x8000, scoped, tag = 'input window, operand 0']
    #allocation4 [shape = 's32[2]{0}', space=sflag, size = 0x8, scoped, tag = 'scoped memory for tpu_custom_call.1']
    #allocation5 [shape = 's32[2]{0}', space=sflag, size = 0x8, scoped, tag = 'scoped memory for tpu_custom_call.1']
    #allocation6 [shape = 'u8[32768]{0}', space=vmem, size = 0x8000, scoped, tag = 'output window, operand 0']
    %6 = vsyncpa [#allocation4], 0
    %s7 = scalar_lea.sflag [#allocation4], 1
    %8 = vsyncpa %s7, 0
    %9 = vsyncpa [#allocation5], 0
    %s10 = scalar_lea.sflag [#allocation5], 1
    %11 = vsyncpa %s10, 0
    loop: start=0, step=1, limit=6
    $region2: #{tpu_custom_call.1} parent=1 // loop_pre_header
      _
    $region3: #{tpu_custom_call.1} parent=1 // loop_header
      %s13 = sphi 0, %s17
      %p14 = scmp.ge.s32.totalorder %s13, 6
      %s23 = sphi 0, %s25
      %s26 = sphi 0, %s23
      %s27 = sphi 0, %s26
      %s43 = sphi 0, %s27
      %s49 = sphi 0, %s51
      %s52 = sphi 0, %s49
      %s53 = sphi 0, %s52
      %s69 = sphi 0, %s53
    $region4: #{tpu_custom_call.1} parent=1 // loop_header_branch
      %16 = sbr.rel (%p14) target = $region8
    $region5: #{tpu_custom_call.1} parent=1 // loop_body
      %s18 = ssub.s32 %s13, 1
      %s19 = ssub.s32 %s13, 2
      %s20 = sadd.s32 %s13, 1
      %s21 = ssub.s32 %s13, %s20
      %p22 = scmp.eq.s32.totalorder %s21, 0
      %s24 = sadd.s32 %s23, 1
      %s25 = scalar_select %p22, %s23, %s24
      %p28 = pneg %p22
      %p29 = scmp.eq.s32.totalorder %s13, 3
      %p30 = por %p28, %p29
      %p31 = scmp.ne.s32.totalorder %s23, %s26
      %p32 = scmp.eq.s32.totalorder %s13, 0
      %p33 = por %p31, %p32
      %p34 = scmp.ne.s32.totalorder %s23, %s26
      %p35 = scmp.eq.s32.totalorder %s18, 3
      %p36 = por %p34, %p35
      %p37 = scmp.ne.s32.totalorder %s26, %s27
      %p38 = scmp.eq.s32.totalorder %s18, 0
      %p39 = por %p37, %p38
      %p40 = scmp.ne.s32.totalorder %s26, %s27
      %p41 = scmp.eq.s32.totalorder %s19, 3
      %p42 = por %p40, %p41
      %p44 = scmp.ne.s32.totalorder %s27, %s43
      %p45 = scmp.eq.s32.totalorder %s19, 0
      %p46 = por %p44, %p45
      %s47 = ssub.s32 %s13, %s20
      %p48 = scmp.eq.s32.totalorder %s47, 0
      %s50 = sadd.s32 %s49, 1
      %s51 = scalar_select %p48, %s49, %s50
      %p54 = pneg %p48
      %p55 = scmp.eq.s32.totalorder %s13, 3
      %p56 = por %p54, %p55
      %p57 = scmp.ne.s32.totalorder %s49, %s52
      %p58 = scmp.eq.s32.totalorder %s13, 0
      %p59 = por %p57, %p58
      %p60 = scmp.ne.s32.totalorder %s49, %s52
      %p61 = scmp.eq.s32.totalorder %s18, 3
      %p62 = por %p60, %p61
      %p63 = scmp.ne.s32.totalorder %s52, %s53
      %p64 = scmp.eq.s32.totalorder %s18, 0
      %p65 = por %p63, %p64
      %p66 = scmp.ne.s32.totalorder %s52, %s53
      %p67 = scmp.eq.s32.totalorder %s19, 3
      %p68 = por %p66, %p67
      %p70 = scmp.ne.s32.totalorder %s53, %s69
      %p71 = scmp.eq.s32.totalorder %s19, 0
      %p72 = por %p70, %p71
      %p73 = scmp.le.s32.totalorder 1, %s13
      %p74 = scmp.lt.s32.totalorder %s13, 5
      %p75 = pnand %p73, %p74
      %p76 = pneg %p75
      // Predicated region
      $region9: #{tpu_custom_call.1} parent=5 // pred_check
        _
      $region10: #{tpu_custom_call.1} parent=5 // pred_check_branch
        %78 = sbr.rel (%p75) target = $region12
      $region11: #{tpu_custom_call.1} parent=5 // pred_region
        %s79 = ssub.s32 %s13, 1
      $region12: #{tpu_custom_call.1} parent=5 // pred_fallthru
        _
      %p80 = scmp.lt.s32.totalorder %s13, 4
      // Predicated region
      $region13: #{tpu_custom_call.1} parent=5 // pred_check
        %p81 = pneg %p80
      $region14: #{tpu_custom_call.1} parent=5 // pred_check_branch
        %83 = sbr.rel (%p81) target = $region16
      $region15: #{tpu_custom_call.1} parent=5 // pred_region
        // Predicated region
        $region17: #{tpu_custom_call.1} parent=15 // pred_check
          %p84 = pneg %p33
        $region18: #{tpu_custom_call.1} parent=15 // pred_check_branch
          %86 = sbr.rel (%p84) target = $region20
        $region19: #{tpu_custom_call.1} parent=15 // pred_region
          %s87 = sand.u32 %s23, 1
          %s88 = scalar_lea.sflag [#allocation4], %s87
          %s89 = sand.u32 %s23, 1
          %s90 = smul.addr %s89, 32
          %s91 = scalar_lea.vmem [#allocation3], %s90
          %s92 = smul.u32 2, %s13
          %94 = vsyncadd %s88, 0
          %s95 = smul.addr %s92, 2
          %s96 = smul.addr %s95, 8
          %s97 = scalar_lea.hbm %s0, %s96
          %s98 = sshll.u32 %s97, 4
          %s99 = int_to_ptr.hbm [resolvable:$true] %s98
          %s100 = sshll.u32 %s91, 4
          %s101 = int_to_ptr.vmem [resolvable:$true] %s100
          %106 = dma.hbm_to_vmem [thread:$0]  %s99, 512, %s101, %s88, 128, 128, 8
        $region20: #{tpu_custom_call.1} parent=15 // pred_fallthru
          _
      $region16: #{tpu_custom_call.1} parent=5 // pred_fallthru
        _
      %p107 = scmp.le.s32.totalorder 1, %s13
      %p108 = scmp.lt.s32.totalorder %s13, 5
      %p109 = pnand %p107, %p108
      %p110 = pneg %p109
      // Predicated region
      $region21: #{tpu_custom_call.1} parent=5 // pred_check
        _
      $region22: #{tpu_custom_call.1} parent=5 // pred_check_branch
        %112 = sbr.rel (%p109) target = $region24
      $region23: #{tpu_custom_call.1} parent=5 // pred_region
        %s113 = ssub.s32 %s13, 1
        %s114 = sand.u32 %s26, 1
        %s115 = scalar_lea.sflag [#allocation4], %s114
        %s116 = sand.u32 %s26, 1
        %s117 = smul.addr %s116, 32
        %s118 = scalar_lea.vmem [#allocation3], %s117
        // Predicated region
        $region25: #{tpu_custom_call.1} parent=23 // pred_check
          %p119 = pneg %p39
        $region26: #{tpu_custom_call.1} parent=23 // pred_check_branch
          %121 = sbr.rel (%p119) target = $region28
        $region27: #{tpu_custom_call.1} parent=23 // pred_region
          %123 = dma.done %s115, 512
        $region28: #{tpu_custom_call.1} parent=23 // pred_fallthru
          _
        %s124 = sand.u32 %s26, 1
        %s125 = scalar_lea.sflag [#allocation4], %s124
        %s126 = sand.u32 %s26, 1
        %s127 = smul.addr %s126, 32
        %s128 = scalar_lea.vmem [#allocation3], %s127
        %p129 = pneg %p39
        %p130 = pneg %p36
        %p131 = pneg %p65
        %p132 = pneg %p62
        %s133 = sand.u32 %s52, 1
        %s134 = scalar_lea.sflag [#allocation5], %s133
        %s135 = sand.u32 %s52, 1
        %s136 = smul.addr %s135, 32
        %s137 = scalar_lea.vmem [#allocation6], %s136
        %s138 = smul.u32 2, %s18
        %s139 = smul.u32 2, %s18
        %vm140 = vcmask 139264
        %141 = vst.msk [vmem:[#allocation2] sm:$0x1] %vm140, 0.0
        %142 = vst.msk [vmem:[#allocation2 + $0x18] sm:$0x1] %vm140, 0.0
        %143 = vst.msk [vmem:[#allocation2 + $0x11] sm:$0x1] %vm140, 0.0
        %144 = vst.msk [vmem:[#allocation2 + $0x29] sm:$0x1] %vm140, 0.0
        %vm145 = vcmask 7168
        %146 = vst.msk [vmem:[#allocation2] sm:$0xff] %vm145, 0.0
        %147 = vst.msk [vmem:[#allocation2 + $0x8] sm:$0xff] %vm145, 0.0
        %vm148 = vcmask 1024
        %149 = vst.msk [vmem:[#allocation2 + $0x10] sm:$0x3] %vm148, 0.0
        %150 = vst.msk [vmem:[#allocation2 + $0x18] sm:$0xff] %vm145, 0.0
        %151 = vst.msk [vmem:[#allocation2 + $0x20] sm:$0xff] %vm145, 0.0
        %152 = vst.msk [vmem:[#allocation2 + $0x28] sm:$0x3] %vm148, 0.0
        %vm153 = vcmask 146568
        %154 = vst.msk [vmem:[#allocation2] sm:$0xff] %vm153, 0.0
        %155 = vst.msk [vmem:[#allocation2 + $0x8] sm:$0xff] %vm153, 0.0
        %vm156 = vcmask 140424
        %157 = vst.msk [vmem:[#allocation2 + $0x10] sm:$0x3] %vm156, 0.0
        %158 = vst.msk [vmem:[#allocation2 + $0x18] sm:$0xff] %vm153, 0.0
        %159 = vst.msk [vmem:[#allocation2 + $0x20] sm:$0xff] %vm153, 0.0
        %160 = vst.msk [vmem:[#allocation2 + $0x28] sm:$0x3] %vm156, 0.0
        %v161 = vld [vmem:[%s118] sm:$0xff]
        %v162 = vld [vmem:[%s118 + $0x8] sm:$0xff]
        %v163 = vld [vmem:[%s118 + $0x10] sm:$0xff]
        %v164 = vld [vmem:[%s118 + $0x18] sm:$0xff]
        %169 = vrot.lane.b32.xlu0 %v161, 1
        %v170 = vpop.permute.xlu0 %169
        %171 = vrot.lane.b32.xlu0 %v162, 1
        %v172 = vpop.permute.xlu0 %171
        %173 = vrot.lane.b32.xlu0 %v163, 1
        %v174 = vpop.permute.xlu0 %173
        %175 = vrot.lane.b32.xlu0 %v164, 1
        %v176 = vpop.permute.xlu0 %175
        %vm181 = vcmask 138248
        %182 = vst.msk [vmem:[#allocation2 + $0x1] sm:$0xff] %vm181, %v170
        %183 = vst.msk [vmem:[#allocation2 + $0x9] sm:$0xff] %vm181, %v172
        %184 = vst.msk [vmem:[#allocation2 + $0x19] sm:$0xff] %vm181, %v174
        %185 = vst.msk [vmem:[#allocation2 + $0x21] sm:$0xff] %vm181, %v176
        %v186 = vld [vmem:[#allocation2] sm:$0xff]
        %v187 = vld [vmem:[#allocation2 + $0x8] sm:$0xff]
        %v188 = vld [vmem:[#allocation2 + $0x18] sm:$0xff]
        %v189 = vld [vmem:[#allocation2 + $0x20] sm:$0xff]
        %194 = vrot.lane.b32.xlu0 %v186, 127
        %v195 = vpop.permute.xlu0 %194
        %196 = vrot.lane.b32.xlu0 %v187, 127
        %v197 = vpop.permute.xlu0 %196
        %198 = vrot.lane.b32.xlu0 %v188, 127
        %v199 = vpop.permute.xlu0 %198
        %200 = vrot.lane.b32.xlu0 %v189, 127
        %v201 = vpop.permute.xlu0 %200
        %v206 = vmin.f32 %v186, %v195
        %v207 = vmin.f32 %v187, %v197
        %v208 = vmin.f32 %v188, %v199
        %v209 = vmin.f32 %v189, %v201
        %v210 = vmax.f32 %v186, %v195
        %v211 = vmax.f32 %v187, %v197
        %v212 = vmax.f32 %v188, %v199
        %v213 = vmax.f32 %v189, %v201
        %v214 = vld [vmem:[#allocation2 + $0x1] sm:$0xff]
        %v215 = vld [vmem:[#allocation2 + $0x9] sm:$0xff]
        %v216 = vld [vmem:[#allocation2 + $0x19] sm:$0xff]
        %v217 = vld [vmem:[#allocation2 + $0x21] sm:$0xff]
        %222 = vrot.lane.b32.xlu0 %v214, 127
        %v223 = vpop.permute.xlu0 %222
        %224 = vrot.lane.b32.xlu0 %v215, 127
        %v225 = vpop.permute.xlu0 %224
        %226 = vrot.lane.b32.xlu0 %v216, 127
        %v227 = vpop.permute.xlu0 %226
        %228 = vrot.lane.b32.xlu0 %v217, 127
        %v229 = vpop.permute.xlu0 %228
        %v234 = vmin.f32 %v214, %v223
        %v235 = vmin.f32 %v215, %v225
        %v236 = vmin.f32 %v216, %v227
        %v237 = vmin.f32 %v217, %v229
        %v238 = vmax.f32 %v214, %v223
        %v239 = vmax.f32 %v215, %v225
        %v240 = vmax.f32 %v216, %v227
        %v241 = vmax.f32 %v217, %v229
        %v242 = vld [vmem:[#allocation2 + $0x2] sm:$0xff]
        %v243 = vld [vmem:[#allocation2 + $0xa] sm:$0xff]
        %v244 = vld [vmem:[#allocation2 + $0x1a] sm:$0xff]
        %v245 = vld [vmem:[#allocation2 + $0x22] sm:$0xff]
        %250 = vrot.lane.b32.xlu0 %v242, 127
        %v251 = vpop.permute.xlu0 %250
        %252 = vrot.lane.b32.xlu0 %v243, 127
        %v253 = vpop.permute.xlu0 %252
        %254 = vrot.lane.b32.xlu0 %v244, 127
        %v255 = vpop.permute.xlu0 %254
        %256 = vrot.lane.b32.xlu0 %v245, 127
        %v257 = vpop.permute.xlu0 %256
        %v262 = vmin.f32 %v242, %v251
        %v263 = vmin.f32 %v243, %v253
        %v264 = vmin.f32 %v244, %v255
        %v265 = vmin.f32 %v245, %v257
        %v266 = vmax.f32 %v242, %v251
        %v267 = vmax.f32 %v243, %v253
        %v268 = vmax.f32 %v244, %v255
        %v269 = vmax.f32 %v245, %v257
        %274 = vrot.lane.b32.xlu0 %v206, 127
        %v275 = vpop.permute.xlu0 %274
        %276 = vrot.lane.b32.xlu0 %v207, 127
        %v277 = vpop.permute.xlu0 %276
        %278 = vrot.lane.b32.xlu0 %v208, 127
        %v279 = vpop.permute.xlu0 %278
        %280 = vrot.lane.b32.xlu0 %v209, 127
        %v281 = vpop.permute.xlu0 %280
        %v286 = vmin.f32 %v186, %v275
        %v287 = vmin.f32 %v187, %v277
        %v288 = vmin.f32 %v188, %v279
        %v289 = vmin.f32 %v189, %v281
        %v290 = vmax.f32 %v186, %v275
        %v291 = vmax.f32 %v187, %v277
        %v292 = vmax.f32 %v188, %v279
        %v293 = vmax.f32 %v189, %v281
        %298 = vrot.lane.b32.xlu0 %v234, 127
        %v299 = vpop.permute.xlu0 %298
        %300 = vrot.lane.b32.xlu0 %v235, 127
        %v301 = vpop.permute.xlu0 %300
        %302 = vrot.lane.b32.xlu0 %v236, 127
        %v303 = vpop.permute.xlu0 %302
        %304 = vrot.lane.b32.xlu0 %v237, 127
        %v305 = vpop.permute.xlu0 %304
        %v310 = vmin.f32 %v214, %v299
        %v311 = vmin.f32 %v215, %v301
        %v312 = vmin.f32 %v216, %v303
        %v313 = vmin.f32 %v217, %v305
        %v314 = vmax.f32 %v214, %v299
        %v315 = vmax.f32 %v215, %v301
        %v316 = vmax.f32 %v216, %v303
        %v317 = vmax.f32 %v217, %v305
        %322 = vrot.lane.b32.xlu0 %v262, 127
        %v323 = vpop.permute.xlu0 %322
        %324 = vrot.lane.b32.xlu0 %v263, 127
        %v325 = vpop.permute.xlu0 %324
        %326 = vrot.lane.b32.xlu0 %v264, 127
        %v327 = vpop.permute.xlu0 %326
        %328 = vrot.lane.b32.xlu0 %v265, 127
        %v329 = vpop.permute.xlu0 %328
        %v334 = vmin.f32 %v242, %v323
        %v335 = vmin.f32 %v243, %v325
        %v336 = vmin.f32 %v244, %v327
        %v337 = vmin.f32 %v245, %v329
        %v338 = vmax.f32 %v242, %v323
        %v339 = vmax.f32 %v243, %v325
        %v340 = vmax.f32 %v244, %v327
        %v341 = vmax.f32 %v245, %v329
        %346 = vrot.lane.b32.xlu0 %v210, 127
        %v347 = vpop.permute.xlu0 %346
        %348 = vrot.lane.b32.xlu0 %v211, 127
        %v349 = vpop.permute.xlu0 %348
        %350 = vrot.lane.b32.xlu0 %v212, 127
        %v351 = vpop.permute.xlu0 %350
        %352 = vrot.lane.b32.xlu0 %v213, 127
        %v353 = vpop.permute.xlu0 %352
        %v358 = vmin.f32 %v290, %v347
        %v359 = vmin.f32 %v291, %v349
        %v360 = vmin.f32 %v292, %v351
        %v361 = vmin.f32 %v293, %v353
        %v362 = vmax.f32 %v290, %v347
        %v363 = vmax.f32 %v291, %v349
        %v364 = vmax.f32 %v292, %v351
        %v365 = vmax.f32 %v293, %v353
        %370 = vrot.lane.b32.xlu0 %v238, 127
        %v371 = vpop.permute.xlu0 %370
        %372 = vrot.lane.b32.xlu0 %v239, 127
        %v373 = vpop.permute.xlu0 %372
        %374 = vrot.lane.b32.xlu0 %v240, 127
        %v375 = vpop.permute.xlu0 %374
        %376 = vrot.lane.b32.xlu0 %v241, 127
        %v377 = vpop.permute.xlu0 %376
        %v382 = vmin.f32 %v314, %v371
        %v383 = vmin.f32 %v315, %v373
        %v384 = vmin.f32 %v316, %v375
        %v385 = vmin.f32 %v317, %v377
        %v386 = vmax.f32 %v314, %v371
        %v387 = vmax.f32 %v315, %v373
        %v388 = vmax.f32 %v316, %v375
        %v389 = vmax.f32 %v317, %v377
        %394 = vrot.lane.b32.xlu0 %v266, 127
        %v395 = vpop.permute.xlu0 %394
        %396 = vrot.lane.b32.xlu0 %v267, 127
        %v397 = vpop.permute.xlu0 %396
        %398 = vrot.lane.b32.xlu0 %v268, 127
        %v399 = vpop.permute.xlu0 %398
        %400 = vrot.lane.b32.xlu0 %v269, 127
        %v401 = vpop.permute.xlu0 %400
        %v406 = vmin.f32 %v338, %v395
        %v407 = vmin.f32 %v339, %v397
        %v408 = vmin.f32 %v340, %v399
        %v409 = vmin.f32 %v341, %v401
        %v410 = vmax.f32 %v338, %v395
        %v411 = vmax.f32 %v339, %v397
        %v412 = vmax.f32 %v340, %v399
        %v413 = vmax.f32 %v341, %v401
        %v414 = vmax.f32 %v286, %v310
        %v415 = vmax.f32 %v287, %v311
        %v416 = vmax.f32 %v288, %v312
        %v417 = vmax.f32 %v289, %v313
        %v418 = vmin.f32 %v386, %v410
        %v419 = vmin.f32 %v387, %v411
        %v420 = vmin.f32 %v388, %v412
        %v421 = vmin.f32 %v389, %v413
        %v422 = vmin.f32 %v382, %v406
        %v423 = vmin.f32 %v383, %v407
        %v424 = vmin.f32 %v384, %v408
        %v425 = vmin.f32 %v385, %v409
        %v426 = vmax.f32 %v382, %v406
        %v427 = vmax.f32 %v383, %v407
        %v428 = vmax.f32 %v384, %v408
        %v429 = vmax.f32 %v385, %v409
        %v430 = vmax.f32 %v414, %v334
        %v431 = vmax.f32 %v415, %v335
        %v432 = vmax.f32 %v416, %v336
        %v433 = vmax.f32 %v417, %v337
        %v434 = vmax.f32 %v358, %v422
        %v435 = vmax.f32 %v359, %v423
        %v436 = vmax.f32 %v360, %v424
        %v437 = vmax.f32 %v361, %v425
        %v438 = vmin.f32 %v362, %v418
        %v439 = vmin.f32 %v363, %v419
        %v440 = vmin.f32 %v364, %v420
        %v441 = vmin.f32 %v365, %v421
        %v442 = vmin.f32 %v434, %v426
        %v443 = vmin.f32 %v435, %v427
        %v444 = vmin.f32 %v436, %v428
        %v445 = vmin.f32 %v437, %v429
        %v446 = vmin.f32 %v442, %v438
        %v447 = vmin.f32 %v443, %v439
        %v448 = vmin.f32 %v444, %v440
        %v449 = vmin.f32 %v445, %v441
        %v450 = vmax.f32 %v442, %v438
        %v451 = vmax.f32 %v443, %v439
        %v452 = vmax.f32 %v444, %v440
        %v453 = vmax.f32 %v445, %v441
        %v454 = vmax.f32 %v430, %v446
        %v455 = vmax.f32 %v431, %v447
        %v456 = vmax.f32 %v432, %v448
        %v457 = vmax.f32 %v433, %v449
        %v458 = vmin.f32 %v454, %v450
        %v459 = vmin.f32 %v455, %v451
        %v460 = vmin.f32 %v456, %v452
        %v461 = vmin.f32 %v457, %v453
        %vm462 = vcmask 130048
        %463 = vst.msk [vmem:[%s137] sm:$0xff] %vm462, %v458
        %464 = vst.msk [vmem:[%s137 + $0x8] sm:$0xff] %vm462, %v459
        %465 = vst.msk [vmem:[%s137 + $0x10] sm:$0xff] %vm462, %v460
        %466 = vst.msk [vmem:[%s137 + $0x18] sm:$0xff] %vm462, %v461
        %s467 = sand.u32 %s52, 1
        %s468 = scalar_lea.sflag [#allocation5], %s467
        %s469 = sand.u32 %s52, 1
        %s470 = smul.addr %s469, 32
        %s471 = scalar_lea.vmem [#allocation6], %s470
        // Predicated region
        $region29: #{tpu_custom_call.1} parent=23 // pred_check
          %p472 = pneg %p62
        $region30: #{tpu_custom_call.1} parent=23 // pred_check_branch
          %474 = sbr.rel (%p472) target = $region32
        $region31: #{tpu_custom_call.1} parent=23 // pred_region
          %s475 = smul.u32 2, %s18
          %477 = vsyncadd %s468, 0
          %s478 = smul.addr %s475, 2
          %s479 = smul.addr %s478, 8
          %s480 = scalar_lea.hbm %s1, %s479
          %s481 = sshll.u32 %s471, 4
          %s482 = int_to_ptr.vmem [resolvable:$true] %s481
          %s483 = sshll.u32 %s480, 4
          %s484 = int_to_ptr.hbm [resolvable:$true] %s483
          %489 = dma.vmem_to_hbm [thread:$0]  %s482, 512, %s484, %s468, 128, 128, 8
        $region32: #{tpu_custom_call.1} parent=23 // pred_fallthru
          _
      $region24: #{tpu_custom_call.1} parent=5 // pred_fallthru
        _
      %p490 = scmp.le.s32.totalorder 2, %s13
      // Predicated region
      $region33: #{tpu_custom_call.1} parent=5 // pred_check
        %p491 = pneg %p490
      $region34: #{tpu_custom_call.1} parent=5 // pred_check_branch
        %493 = sbr.rel (%p491) target = $region36
      $region35: #{tpu_custom_call.1} parent=5 // pred_region
        %s494 = ssub.s32 %s13, 2
        // Predicated region
        $region37: #{tpu_custom_call.1} parent=35 // pred_check
          %p495 = pneg %p68
        $region38: #{tpu_custom_call.1} parent=35 // pred_check_branch
          %497 = sbr.rel (%p495) target = $region40
        $region39: #{tpu_custom_call.1} parent=35 // pred_region
          %s498 = sand.u32 %s53, 1
          %s499 = scalar_lea.sflag [#allocation5], %s498
          %s500 = sand.u32 %s53, 1
          %s501 = smul.addr %s500, 32
          %s502 = scalar_lea.vmem [#allocation6], %s501
          %504 = dma.done %s499, 512
        $region40: #{tpu_custom_call.1} parent=35 // pred_fallthru
          _
      $region36: #{tpu_custom_call.1} parent=5 // pred_fallthru
        _
    $region6: #{tpu_custom_call.1} parent=1 // loop_footer
      %s17 = sadd.s32 1, %s13
    $region7: #{tpu_custom_call.1} parent=1 // loop_footer_branch
      %12 = sbr.rel target = $region3
    $region8: #{tpu_custom_call.1} parent=1 // loop_exit
      _
    %505 = vsyncpa [#allocation4], 1
    %s506 = scalar_lea.sflag [#allocation4], 1
    %507 = vsyncpa %s506, 1
    %508 = vsyncpa [#allocation5], 1
    %s509 = scalar_lea.sflag [#allocation5], 1
    %510 = vsyncpa %s509, 1

</llo_original>
